<compile_context>
chip_gen: v6e
topology: v6e:2x2x1
jax: 0.10.0
libtpu: 0.0.40
codegen_flags: <defaults>
</compile_context>

<pallas_src>
import functools

import jax
import jax.numpy as jnp
from jax.experimental import pallas as pl
from jax.experimental.pallas import tpu as pltpu


def _conv_bn_relu_kernel(x_ref, w_ref, scale_ref, bias_ref, o_ref, p_ref, *,
                         kh, kw, c_in, wp, q, dilation, apply_relu):
    # x_ref:     (1, C_in, L)   flattened padded image (bf16),
    #                           L = HP*WP + (KW-1)*dilation (trailing zeros)
    # w_ref:     (C_out, K)     K = KH*KW*C_in, tap-major (i, j, ci) order
    # scale_ref: (C_out, 1) f32 folded BN scale = gamma / sqrt(var+eps)
    # bias_ref:  (C_out, 1) f32 folded BN bias  = beta - mean*scale
    # o_ref:     (1, C_out, Q)  Q = OH*WP (junk columns sliced off outside)
    # p_ref:     (K, Q) f32     patch scratch (assembled fresh every step)
    #
    # Patch assembly: tap (i, j) of the convolution is a pure lane shift of
    # the flattened image by (i*WP + j)*dilation, so each tap contributes a
    # contiguous (C_in, Q) lane slice.  All offsets are static Python ints.
    for i in range(kh):
        for j in range(kw):
            t = i * kw + j
            off = (i * wp + j) * dilation
            p_ref[t * c_in:(t + 1) * c_in, :] = (
                x_ref[0, :, off:off + q].astype(jnp.float32))

    # Single MXU contraction: (C_out, K) @ (K, Q) -> (C_out, Q), f32 acc.
    # (Patch values are exact bf16 values, so the cast back is lossless.)
    acc = jnp.dot(w_ref[...], p_ref[...].astype(jnp.bfloat16),
                  preferred_element_type=jnp.float32)

    y = acc * scale_ref[...] + bias_ref[...]       # f32 epilogue (v5e-safe)
    if apply_relu:
        y = jnp.maximum(y, 0.0)
    o_ref[0] = y.astype(o_ref.dtype)


@functools.partial(
    jax.jit,
    static_argnames=("kernel_size", "stride", "padding", "dilation", "groups",
                     "relu", "bn", "eps", "compute_dtype"),
)
def basic_conv_forward(
    x_nchw,           # (N, C_in, H, W)
    conv_weight,      # (C_out, C_in, KH, KW)  -- PyTorch layout
    bn_gamma,         # (C_out,)
    bn_beta,          # (C_out,)
    bn_running_mean,  # (C_out,)
    bn_running_var,   # (C_out,)
    *,
    kernel_size,
    stride=1,
    padding=0,
    dilation=1,
    groups=1,
    relu=True,
    bn=True,
    eps=1e-5,
    compute_dtype=jnp.bfloat16,
):
    if groups != 1:
        raise NotImplementedError("groups > 1 not implemented")  # TODO(synk)
    if stride != 1:
        raise NotImplementedError("stride > 1 not implemented")  # TODO(synk)

    c_out, c_in, kh, kw = conv_weight.shape
    assert kh == kernel_size and kw == kernel_size

    n, c_in_x, h, w = x_nchw.shape
    assert c_in_x == c_in

    hp = h + 2 * padding
    wp = w + 2 * padding
    oh = hp - (kh - 1) * dilation          # stride == 1
    ow = wp - (kw - 1) * dilation
    q = oh * wp                            # padded-width flattened output
    k_fold = kh * kw * c_in
    extra = (kw - 1) * dilation            # keeps the last tap slice in-bounds
    flat_len = hp * wp + extra

    # NCHW stays native: pad spatially, flatten (HP, WP) into the lane axis,
    # add `extra` trailing zeros (they only feed discarded columns).
    x_pad = jnp.pad(x_nchw, ((0, 0), (0, 0),
                             (padding, padding), (padding, padding)))
    x_flat = x_pad.reshape(n, c_in, hp * wp)
    x_flat = jnp.pad(x_flat, ((0, 0), (0, 0), (0, extra)))
    x_in = x_flat.astype(compute_dtype)                       # (N, C_in, L)

    # (C_out, C_in, KH, KW) -> (C_out, KH, KW, C_in) -> (C_out, K), tap-major.
    w_mat = jnp.transpose(conv_weight, (0, 2, 3, 1)).reshape(c_out, k_fold)
    w_mat = w_mat.astype(compute_dtype)

    # Fold inference-mode BN into per-channel scale / bias (f32).
    if bn:
        scale = bn_gamma.astype(jnp.float32) * jax.lax.rsqrt(
            bn_running_var.astype(jnp.float32) + eps)
        bias = (bn_beta.astype(jnp.float32)
                - bn_running_mean.astype(jnp.float32) * scale)
    else:
        scale = jnp.ones((c_out,), jnp.float32)
        bias = jnp.zeros((c_out,), jnp.float32)
    scale = scale.reshape(c_out, 1)
    bias = bias.reshape(c_out, 1)

    kernel = functools.partial(
        _conv_bn_relu_kernel,
        kh=kh, kw=kw, c_in=c_in, wp=wp, q=q,
        dilation=dilation, apply_relu=relu)

    out_dtype = x_nchw.dtype
    in_itemsize = jnp.dtype(compute_dtype).itemsize
    out_itemsize = jnp.dtype(out_dtype).itemsize
    # Honest estimate: real c_out, post-slice output bytes (advisory only).
    flops = 2 * n * oh * ow * kh * kw * c_in * c_out
    bytes_accessed = (x_in.size * in_itemsize
                      + w_mat.size * in_itemsize
                      + scale.size * 4 + bias.size * 4
                      + n * c_out * oh * ow * out_itemsize)

    out_raw = pl.pallas_call(
        kernel,
        out_shape=jax.ShapeDtypeStruct((n, c_out, q), out_dtype),
        grid_spec=pltpu.PrefetchScalarGridSpec(
            num_scalar_prefetch=0,
            grid=(n,),
            in_specs=[
                # Whole flattened padded image per step (one HBM read each).
                pl.BlockSpec((1, c_in, flat_len), lambda b: (b, 0, 0)),
                # Small folded weights / BN params, constant-indexed
                # (resident across the grid, no re-DMA).
                pl.BlockSpec((c_out, k_fold), lambda b: (0, 0)),
                pl.BlockSpec((c_out, 1), lambda b: (0, 0)),
                pl.BlockSpec((c_out, 1), lambda b: (0, 0)),
            ],
            out_specs=pl.BlockSpec((1, c_out, q), lambda b: (b, 0, 0)),
            scratch_shapes=[pltpu.VMEM((k_fold, q), jnp.float32)],
        ),
        compiler_params=pltpu.CompilerParams(
            dimension_semantics=("parallel",)),
        cost_estimate=pl.CostEstimate(
            flops=flops, transcendentals=0, bytes_accessed=bytes_accessed),
    )(x_in, w_mat, scale, bias)

    # (N, C_out, OH*WP) -> (N, C_out, OH, WP) -> drop padded-width columns.
    out = out_raw.reshape(n, c_out, oh, wp)[:, :, :, :ow]
    return out  # already NCHW


if __name__ == "__main__":
    # BasicConv(in_planes=4, out_planes=8, kernel_size=3, stride=1, padding=1)
    N, C_IN, H, W = 2, 4, 16, 16
    C_OUT, KSIZE, STRIDE, PAD = 8, 3, 1, 1

    key = jax.random.PRNGKey(0)
    kx, kw_ = jax.random.split(key)

    x = jax.random.normal(kx, (N, C_IN, H, W), dtype=jnp.float32)

    # Deterministic synthetic parameters (no checkpoint).
    fan_in = C_IN * KSIZE * KSIZE
    conv_w = jax.random.normal(
        kw_, (C_OUT, C_IN, KSIZE, KSIZE), dtype=jnp.float32
    ) * (1.0 / fan_in) ** 0.5
    gamma = jnp.linspace(0.5, 1.5, C_OUT, dtype=jnp.float32)
    beta = jnp.linspace(-0.1, 0.1, C_OUT, dtype=jnp.float32)
    running_mean = jnp.zeros((C_OUT,), dtype=jnp.float32)
    running_var = jnp.ones((C_OUT,), dtype=jnp.float32)

    out = basic_conv_forward(
        x, conv_w, gamma, beta, running_mean, running_var,
        kernel_size=KSIZE, stride=STRIDE, padding=PAD,
    )
    out = jax.block_until_ready(out)

    # Pure-JAX reference with the same bf16-rounded conv operands
    # (the kernel accumulates in f32; the BN/ReLU epilogue is f32 in both).
    xq = x.astype(jnp.bfloat16).astype(jnp.float32)
    wq = conv_w.astype(jnp.bfloat16).astype(jnp.float32)
    ref_conv = jax.lax.conv_general_dilated(
        xq, wq, window_strides=(STRIDE, STRIDE),
        padding=[(PAD, PAD), (PAD, PAD)],
        dimension_numbers=("NCHW", "OIHW", "NCHW"),
    )
    ref_scale = gamma / jnp.sqrt(running_var + 1e-5)
    ref_shift = beta - running_mean * ref_scale
    ref = jnp.maximum(
        ref_conv * ref_scale[None, :, None, None]
        + ref_shift[None, :, None, None], 0.0)

    assert out.shape == (N, C_OUT, H, W)
    max_err = float(jnp.max(jnp.abs(out - ref)))
    assert jnp.allclose(out, ref, atol=2e-3, rtol=2e-3), max_err
    print("KERNEL_OK")
</pallas_src>

<mosaic_0001>
module attributes {stable_mosaic.version = 11 : i64} {
  func.func @_conv_bn_relu_kernel(%arg0: i32, %arg1: memref<1x4x326xbf16, #tpu.memory_space<vmem>>, %arg2: memref<8x36xbf16, #tpu.memory_space<vmem>>, %arg3: memref<8x1xf32, #tpu.memory_space<vmem>>, %arg4: memref<8x1xf32, #tpu.memory_space<vmem>>, %arg5: memref<1x8x288xf32, #tpu.memory_space<vmem>>, %arg6: memref<36x288xf32, #tpu.memory_space<vmem>>) attributes {dimension_semantics = [#tpu.dimension_semantics<parallel>], iteration_bounds = array<i64: 2>, scalar_prefetch = 0 : i64, scratch_operands = 1 : i64, tpu.core_type = #tpu.core_type<tc>, window_params = [{transform_indices = @transform_0, window_bounds = array<i64: 1, 4, 326>}, {pipeline_mode = #tpu.pipeline_mode<synchronous>, transform_indices = @transform_1, window_bounds = array<i64: 8, 36>}, {pipeline_mode = #tpu.pipeline_mode<synchronous>, transform_indices = @transform_2, window_bounds = array<i64: 8, 1>}, {pipeline_mode = #tpu.pipeline_mode<synchronous>, transform_indices = @transform_3, window_bounds = array<i64: 8, 1>}, {transform_indices = @transform_4, window_bounds = array<i64: 1, 8, 288>}]} {
    %c0 = arith.constant 0 : index
    %c0_0 = arith.constant 0 : index
    %c0_1 = arith.constant 0 : index
    %0 = vector.load %arg1[%c0, %c0_0, %c0_1] : memref<1x4x326xbf16, #tpu.memory_space<vmem>>, vector<1x4x288xbf16>
    %1 = vector.shape_cast %0 : vector<1x4x288xbf16> to vector<4x288xbf16>
    %2 = arith.extf %1 : vector<4x288xbf16> to vector<4x288xf32>
    %c0_2 = arith.constant 0 : index
    %c0_3 = arith.constant 0 : index
    %3 = vector.load %arg6[%c0_2, %c0_3] : memref<36x288xf32, #tpu.memory_space<vmem>>, vector<4x288xf32>
    tpu.vector_store %arg6[%c0_2, %c0_3], %2 {strides = array<i32>} : memref<36x288xf32, #tpu.memory_space<vmem>>, vector<4x288xf32>,
    %c0_4 = arith.constant 0 : index
    %c0_5 = arith.constant 0 : index
    %c1 = arith.constant 1 : index
    %4 = vector.load %arg1[%c0_4, %c0_5, %c1] : memref<1x4x326xbf16, #tpu.memory_space<vmem>>, vector<1x4x288xbf16>
    %5 = vector.shape_cast %4 : vector<1x4x288xbf16> to vector<4x288xbf16>
    %6 = arith.extf %5 : vector<4x288xbf16> to vector<4x288xf32>
    %c4 = arith.constant 4 : index
    %c0_6 = arith.constant 0 : index
    %7 = vector.load %arg6[%c4, %c0_6] : memref<36x288xf32, #tpu.memory_space<vmem>>, vector<4x288xf32>
    tpu.vector_store %arg6[%c4, %c0_6], %6 {strides = array<i32>} : memref<36x288xf32, #tpu.memory_space<vmem>>, vector<4x288xf32>,
    %c0_7 = arith.constant 0 : index
    %c0_8 = arith.constant 0 : index
    %c2 = arith.constant 2 : index
    %8 = vector.load %arg1[%c0_7, %c0_8, %c2] : memref<1x4x326xbf16, #tpu.memory_space<vmem>>, vector<1x4x288xbf16>
    %9 = vector.shape_cast %8 : vector<1x4x288xbf16> to vector<4x288xbf16>
    %10 = arith.extf %9 : vector<4x288xbf16> to vector<4x288xf32>
    %c8 = arith.constant 8 : index
    %c0_9 = arith.constant 0 : index
    %11 = vector.load %arg6[%c8, %c0_9] : memref<36x288xf32, #tpu.memory_space<vmem>>, vector<4x288xf32>
    tpu.vector_store %arg6[%c8, %c0_9], %10 {strides = array<i32>} : memref<36x288xf32, #tpu.memory_space<vmem>>, vector<4x288xf32>,
    %c0_10 = arith.constant 0 : index
    %c0_11 = arith.constant 0 : index
    %c18 = arith.constant 18 : index
    %12 = vector.load %arg1[%c0_10, %c0_11, %c18] : memref<1x4x326xbf16, #tpu.memory_space<vmem>>, vector<1x4x288xbf16>
    %13 = vector.shape_cast %12 : vector<1x4x288xbf16> to vector<4x288xbf16>
    %14 = arith.extf %13 : vector<4x288xbf16> to vector<4x288xf32>
    %c12 = arith.constant 12 : index
    %c0_12 = arith.constant 0 : index
    %15 = vector.load %arg6[%c12, %c0_12] : memref<36x288xf32, #tpu.memory_space<vmem>>, vector<4x288xf32>
    tpu.vector_store %arg6[%c12, %c0_12], %14 {strides = array<i32>} : memref<36x288xf32, #tpu.memory_space<vmem>>, vector<4x288xf32>,
    %c0_13 = arith.constant 0 : index
    %c0_14 = arith.constant 0 : index
    %c19 = arith.constant 19 : index
    %16 = vector.load %arg1[%c0_13, %c0_14, %c19] : memref<1x4x326xbf16, #tpu.memory_space<vmem>>, vector<1x4x288xbf16>
    %17 = vector.shape_cast %16 : vector<1x4x288xbf16> to vector<4x288xbf16>
    %18 = arith.extf %17 : vector<4x288xbf16> to vector<4x288xf32>
    %c16 = arith.constant 16 : index
    %c0_15 = arith.constant 0 : index
    %19 = vector.load %arg6[%c16, %c0_15] : memref<36x288xf32, #tpu.memory_space<vmem>>, vector<4x288xf32>
    tpu.vector_store %arg6[%c16, %c0_15], %18 {strides = array<i32>} : memref<36x288xf32, #tpu.memory_space<vmem>>, vector<4x288xf32>,
    %c0_16 = arith.constant 0 : index
    %c0_17 = arith.constant 0 : index
    %c20 = arith.constant 20 : index
    %20 = vector.load %arg1[%c0_16, %c0_17, %c20] : memref<1x4x326xbf16, #tpu.memory_space<vmem>>, vector<1x4x288xbf16>
    %21 = vector.shape_cast %20 : vector<1x4x288xbf16> to vector<4x288xbf16>
    %22 = arith.extf %21 : vector<4x288xbf16> to vector<4x288xf32>
    %c20_18 = arith.constant 20 : index
    %c0_19 = arith.constant 0 : index
    %23 = vector.load %arg6[%c20_18, %c0_19] : memref<36x288xf32, #tpu.memory_space<vmem>>, vector<4x288xf32>
    tpu.vector_store %arg6[%c20_18, %c0_19], %22 {strides = array<i32>} : memref<36x288xf32, #tpu.memory_space<vmem>>, vector<4x288xf32>,
    %c0_20 = arith.constant 0 : index
    %c0_21 = arith.constant 0 : index
    %c36 = arith.constant 36 : index
    %24 = vector.load %arg1[%c0_20, %c0_21, %c36] : memref<1x4x326xbf16, #tpu.memory_space<vmem>>, vector<1x4x288xbf16>
    %25 = vector.shape_cast %24 : vector<1x4x288xbf16> to vector<4x288xbf16>
    %26 = arith.extf %25 : vector<4x288xbf16> to vector<4x288xf32>
    %c24 = arith.constant 24 : index
    %c0_22 = arith.constant 0 : index
    %27 = vector.load %arg6[%c24, %c0_22] : memref<36x288xf32, #tpu.memory_space<vmem>>, vector<4x288xf32>
    tpu.vector_store %arg6[%c24, %c0_22], %26 {strides = array<i32>} : memref<36x288xf32, #tpu.memory_space<vmem>>, vector<4x288xf32>,
    %c0_23 = arith.constant 0 : index
    %c0_24 = arith.constant 0 : index
    %c37 = arith.constant 37 : index
    %28 = vector.load %arg1[%c0_23, %c0_24, %c37] : memref<1x4x326xbf16, #tpu.memory_space<vmem>>, vector<1x4x288xbf16>
    %29 = vector.shape_cast %28 : vector<1x4x288xbf16> to vector<4x288xbf16>
    %30 = arith.extf %29 : vector<4x288xbf16> to vector<4x288xf32>
    %c28 = arith.constant 28 : index
    %c0_25 = arith.constant 0 : index
    %31 = vector.load %arg6[%c28, %c0_25] : memref<36x288xf32, #tpu.memory_space<vmem>>, vector<4x288xf32>
    tpu.vector_store %arg6[%c28, %c0_25], %30 {strides = array<i32>} : memref<36x288xf32, #tpu.memory_space<vmem>>, vector<4x288xf32>,
    %c0_26 = arith.constant 0 : index
    %c0_27 = arith.constant 0 : index
    %c38 = arith.constant 38 : index
    %32 = vector.load %arg1[%c0_26, %c0_27, %c38] : memref<1x4x326xbf16, #tpu.memory_space<vmem>>, vector<1x4x288xbf16>
    %33 = vector.shape_cast %32 : vector<1x4x288xbf16> to vector<4x288xbf16>
    %34 = arith.extf %33 : vector<4x288xbf16> to vector<4x288xf32>
    %c32 = arith.constant 32 : index
    %c0_28 = arith.constant 0 : index
    %35 = vector.load %arg6[%c32, %c0_28] : memref<36x288xf32, #tpu.memory_space<vmem>>, vector<4x288xf32>
    tpu.vector_store %arg6[%c32, %c0_28], %34 {strides = array<i32>} : memref<36x288xf32, #tpu.memory_space<vmem>>, vector<4x288xf32>,
    %c0_29 = arith.constant 0 : index
    %c0_30 = arith.constant 0 : index
    %36 = vector.load %arg2[%c0_29, %c0_30] : memref<8x36xbf16, #tpu.memory_space<vmem>>, vector<8x36xbf16>
    %c0_31 = arith.constant 0 : index
    %c0_32 = arith.constant 0 : index
    %37 = vector.load %arg6[%c0_31, %c0_32] : memref<36x288xf32, #tpu.memory_space<vmem>>, vector<36x288xf32>
    %38 = arith.truncf %37 : vector<36x288xf32> to vector<36x288xbf16>
    %cst = arith.constant dense<0.000000e+00> : vector<8x288xf32>
    %39 = tpu.matmul %36, %38, %cst {dimension_numbers = #tpu.dot_dimension_numbers<[1], [0], [0], [1], [0, 0, 1, 1], [], []>} : vector<8x36xbf16>, vector<36x288xbf16>, vector<8x288xf32> -> vector<8x288xf32>
    %c0_33 = arith.constant 0 : index
    %c0_34 = arith.constant 0 : index
    %40 = vector.load %arg3[%c0_33, %c0_34] : memref<8x1xf32, #tpu.memory_space<vmem>>, vector<8x1xf32>
    %41 = vector.broadcast %40 : vector<8x1xf32> to vector<8x288xf32>
    %42 = arith.mulf %39, %41 : vector<8x288xf32>
    %c0_35 = arith.constant 0 : index
    %c0_36 = arith.constant 0 : index
    %43 = vector.load %arg4[%c0_35, %c0_36] : memref<8x1xf32, #tpu.memory_space<vmem>>, vector<8x1xf32>
    %44 = vector.broadcast %43 : vector<8x1xf32> to vector<8x288xf32>
    %45 = arith.addf %42, %44 : vector<8x288xf32>
    %cst_37 = arith.constant 0.000000e+00 : f32
    %46 = vector.broadcast %cst_37 : f32 to vector<8x288xf32>
    %47 = arith.maximumf %45, %46 : vector<8x288xf32>
    %c0_38 = arith.constant 0 : index
    %c0_39 = arith.constant 0 : index
    %c0_40 = arith.constant 0 : index
    %48 = vector.load %arg5[%c0_38, %c0_39, %c0_40] : memref<1x8x288xf32, #tpu.memory_space<vmem>>, vector<1x8x288xf32>
    %49 = vector.shape_cast %48 : vector<1x8x288xf32> to vector<8x288xf32>
    %50 = vector.shape_cast %47 : vector<8x288xf32> to vector<1x8x288xf32>
    tpu.vector_store %arg5[%c0_38, %c0_39, %c0_40], %50 {strides = array<i32>} : memref<1x8x288xf32, #tpu.memory_space<vmem>>, vector<1x8x288xf32>,
    return
  }
  func.func @transform_0(%arg0: i32) -> (i32, i32, i32) {
    %c0_i32 = arith.constant 0 : i32
    %c0_i32_0 = arith.constant 0 : i32
    %c0_i32_1 = arith.constant 0 : i32
    return %arg0, %c0_i32, %c0_i32_0 : i32, i32, i32
  }
  func.func @transform_1(%arg0: i32) -> (i32, i32) {
    %c0_i32 = arith.constant 0 : i32
    %c0_i32_0 = arith.constant 0 : i32
    %c0_i32_1 = arith.constant 0 : i32
    return %c0_i32, %c0_i32_0 : i32, i32
  }
  func.func @transform_2(%arg0: i32) -> (i32, i32) {
    %c0_i32 = arith.constant 0 : i32
    %c0_i32_0 = arith.constant 0 : i32
    %c0_i32_1 = arith.constant 0 : i32
    return %c0_i32, %c0_i32_0 : i32, i32
  }
  func.func @transform_3(%arg0: i32) -> (i32, i32) {
    %c0_i32 = arith.constant 0 : i32
    %c0_i32_0 = arith.constant 0 : i32
    %c0_i32_1 = arith.constant 0 : i32
    return %c0_i32, %c0_i32_0 : i32, i32
  }
  func.func @transform_4(%arg0: i32) -> (i32, i32, i32) {
    %c0_i32 = arith.constant 0 : i32
    %c0_i32_0 = arith.constant 0 : i32
    %c0_i32_1 = arith.constant 0 : i32
    return %arg0, %c0_i32, %c0_i32_0 : i32, i32, i32
  }
}

</mosaic_0001>

<llo_original>
// kernel: basic_conv_forward.1
$region0: #{basic_conv_forward.1}
  #allocation0 [shape = 'u32[]', space=smem, size = 0x4, offset = 0x4, fixed_abs, tag = 'smem constant byte address 0x4 - core index']
  #allocation1 [shape = 'u32[144,128]{1,0:T(1,128)}', space=vmem, size = 0x12000, scoped, tag = 'internal scratch']
  #allocation2 [shape = 'f32[36,288]{1,0:T(8,128)}', space=vmem, size = 0xf000, scoped, tag = 'scratch operand']
  %s0 = inlined_call_operand.vmem [shape: bf16[2,4,326], index: 0, kind: input, shape index: {}]
  %s1 = inlined_call_operand.vmem [shape: bf16[8,36], index: 1, kind: input, shape index: {}]
  %s2 = inlined_call_operand.vmem [shape: f32[8,1], index: 2, kind: input, shape index: {}]
  %s3 = inlined_call_operand.vmem [shape: f32[8,1], index: 3, kind: input, shape index: {}]
  %s4 = inlined_call_operand.vmem [shape: f32[2,8,288], index: 4, kind: output, shape index: {}]
  %s5 = sld [smem:[#allocation0]]
  $region49: #{basic_conv_forward.1} parent=0
    _
  %s7 = ssub.s32 1, %s5
  %s8 = scalar_select 0, %s7, %s5
  loop: start=0, step=1, limit=4
  $region2: #{basic_conv_forward.1} parent=0 // loop_pre_header
    _
  $region3: #{basic_conv_forward.1} parent=0 // loop_header
    %s10 = sphi 0, %s14
    %p11 = scmp.ge.s32.totalorder %s10, 4
    %s20 = sphi 0, %s22
    %s23 = sphi 0, %s20
    %s24 = sphi 0, %s23
    %s40 = sphi 0, %s24
    %s44 = sphi 0, %s44
    %s46 = sphi 0, %s44
    %s47 = sphi 0, %s46
    %s61 = sphi 0, %s47
    %s65 = sphi 0, %s65
    %s67 = sphi 0, %s65
    %s68 = sphi 0, %s67
    %s82 = sphi 0, %s68
    %s86 = sphi 0, %s86
    %s88 = sphi 0, %s86
    %s89 = sphi 0, %s88
    %s103 = sphi 0, %s89
    %s109 = sphi 0, %s111
    %s112 = sphi 0, %s109
    %s113 = sphi 0, %s112
    %s129 = sphi 0, %s113
  $region4: #{basic_conv_forward.1} parent=0 // loop_header_branch
    %13 = sbr.rel (%p11) target = $region8
  $region5: #{basic_conv_forward.1} parent=0 // loop_body
    %s15 = ssub.s32 %s10, 1
    %s16 = ssub.s32 %s10, 2
    %s17 = sadd.s32 %s10, 1
    %s18 = ssub.s32 %s10, %s17
    %p19 = scmp.eq.s32.totalorder %s18, 0
    %s21 = sadd.s32 %s20, 1
    %s22 = scalar_select %p19, %s20, %s21
    %p25 = pneg %p19
    %p26 = scmp.eq.s32.totalorder %s10, 1
    %p27 = por %p25, %p26
    %p28 = scmp.ne.s32.totalorder %s20, %s23
    %p29 = scmp.eq.s32.totalorder %s10, 0
    %p30 = por %p28, %p29
    %p31 = scmp.ne.s32.totalorder %s20, %s23
    %p32 = scmp.eq.s32.totalorder %s15, 1
    %p33 = por %p31, %p32
    %p34 = scmp.ne.s32.totalorder %s23, %s24
    %p35 = scmp.eq.s32.totalorder %s15, 0
    %p36 = por %p34, %p35
    %p37 = scmp.ne.s32.totalorder %s23, %s24
    %p38 = scmp.eq.s32.totalorder %s16, 1
    %p39 = por %p37, %p38
    %p41 = scmp.ne.s32.totalorder %s24, %s40
    %p42 = scmp.eq.s32.totalorder %s16, 0
    %p43 = por %p41, %p42
    %s45 = sadd.s32 %s44, 1
    %p48 = scmp.eq.s32.totalorder %s10, 1
    %p49 = scmp.ne.s32.totalorder %s44, %s46
    %p50 = scmp.eq.s32.totalorder %s10, 0
    %p51 = por %p49, %p50
    %p52 = scmp.ne.s32.totalorder %s44, %s46
    %p53 = scmp.eq.s32.totalorder %s15, 1
    %p54 = por %p52, %p53
    %p55 = scmp.ne.s32.totalorder %s46, %s47
    %p56 = scmp.eq.s32.totalorder %s15, 0
    %p57 = por %p55, %p56
    %p58 = scmp.ne.s32.totalorder %s46, %s47
    %p59 = scmp.eq.s32.totalorder %s16, 1
    %p60 = por %p58, %p59
    %p62 = scmp.ne.s32.totalorder %s47, %s61
    %p63 = scmp.eq.s32.totalorder %s16, 0
    %p64 = por %p62, %p63
    %s66 = sadd.s32 %s65, 1
    %p69 = scmp.eq.s32.totalorder %s10, 1
    %p70 = scmp.ne.s32.totalorder %s65, %s67
    %p71 = scmp.eq.s32.totalorder %s10, 0
    %p72 = por %p70, %p71
    %p73 = scmp.ne.s32.totalorder %s65, %s67
    %p74 = scmp.eq.s32.totalorder %s15, 1
    %p75 = por %p73, %p74
    %p76 = scmp.ne.s32.totalorder %s67, %s68
    %p77 = scmp.eq.s32.totalorder %s15, 0
    %p78 = por %p76, %p77
    %p79 = scmp.ne.s32.totalorder %s67, %s68
    %p80 = scmp.eq.s32.totalorder %s16, 1
    %p81 = por %p79, %p80
    %p83 = scmp.ne.s32.totalorder %s68, %s82
    %p84 = scmp.eq.s32.totalorder %s16, 0
    %p85 = por %p83, %p84
    %s87 = sadd.s32 %s86, 1
    %p90 = scmp.eq.s32.totalorder %s10, 1
    %p91 = scmp.ne.s32.totalorder %s86, %s88
    %p92 = scmp.eq.s32.totalorder %s10, 0
    %p93 = por %p91, %p92
    %p94 = scmp.ne.s32.totalorder %s86, %s88
    %p95 = scmp.eq.s32.totalorder %s15, 1
    %p96 = por %p94, %p95
    %p97 = scmp.ne.s32.totalorder %s88, %s89
    %p98 = scmp.eq.s32.totalorder %s15, 0
    %p99 = por %p97, %p98
    %p100 = scmp.ne.s32.totalorder %s88, %s89
    %p101 = scmp.eq.s32.totalorder %s16, 1
    %p102 = por %p100, %p101
    %p104 = scmp.ne.s32.totalorder %s89, %s103
    %p105 = scmp.eq.s32.totalorder %s16, 0
    %p106 = por %p104, %p105
    %s107 = ssub.s32 %s10, %s17
    %p108 = scmp.eq.s32.totalorder %s107, 0
    %s110 = sadd.s32 %s109, 1
    %s111 = scalar_select %p108, %s109, %s110
    %p114 = pneg %p108
    %p115 = scmp.eq.s32.totalorder %s10, 1
    %p116 = por %p114, %p115
    %p117 = scmp.ne.s32.totalorder %s109, %s112
    %p118 = scmp.eq.s32.totalorder %s10, 0
    %p119 = por %p117, %p118
    %p120 = scmp.ne.s32.totalorder %s109, %s112
    %p121 = scmp.eq.s32.totalorder %s15, 1
    %p122 = por %p120, %p121
    %p123 = scmp.ne.s32.totalorder %s112, %s113
    %p124 = scmp.eq.s32.totalorder %s15, 0
    %p125 = por %p123, %p124
    %p126 = scmp.ne.s32.totalorder %s112, %s113
    %p127 = scmp.eq.s32.totalorder %s16, 1
    %p128 = por %p126, %p127
    %p130 = scmp.ne.s32.totalorder %s113, %s129
    %p131 = scmp.eq.s32.totalorder %s16, 0
    %p132 = por %p130, %p131
    %p133 = scmp.le.s32.totalorder 1, %s10
    %p134 = scmp.lt.s32.totalorder %s10, 3
    %p135 = pnand %p133, %p134
    %p136 = pneg %p135
    // Predicated region
    $region9: #{basic_conv_forward.1} parent=5 // pred_check
      _
    $region10: #{basic_conv_forward.1} parent=5 // pred_check_branch
      %138 = sbr.rel (%p135) target = $region12
    $region11: #{basic_conv_forward.1} parent=5 // pred_region
      %s139 = ssub.s32 %s10, 1
      // Predicated region
      $region13: #{basic_conv_forward.1} parent=11 // pred_check
        %p140 = pneg %p57
      $region14: #{basic_conv_forward.1} parent=11 // pred_check_branch
        %142 = sbr.rel (%p140) target = $region16
      $region15: #{basic_conv_forward.1} parent=11 // pred_region
        _
      $region16: #{basic_conv_forward.1} parent=11 // pred_fallthru
        _
      // Predicated region
      $region17: #{basic_conv_forward.1} parent=11 // pred_check
        %p143 = pneg %p78
      $region18: #{basic_conv_forward.1} parent=11 // pred_check_branch
        %145 = sbr.rel (%p143) target = $region20
      $region19: #{basic_conv_forward.1} parent=11 // pred_region
        _
      $region20: #{basic_conv_forward.1} parent=11 // pred_fallthru
        _
      // Predicated region
      $region21: #{basic_conv_forward.1} parent=11 // pred_check
        %p146 = pneg %p99
      $region22: #{basic_conv_forward.1} parent=11 // pred_check_branch
        %148 = sbr.rel (%p146) target = $region24
      $region23: #{basic_conv_forward.1} parent=11 // pred_region
        _
      $region24: #{basic_conv_forward.1} parent=11 // pred_fallthru
        _
    $region12: #{basic_conv_forward.1} parent=5 // pred_fallthru
      _
    %p149 = scmp.lt.s32.totalorder %s10, 2
    // Predicated region
    $region25: #{basic_conv_forward.1} parent=5 // pred_check
      %p150 = pneg %p149
    $region26: #{basic_conv_forward.1} parent=5 // pred_check_branch
      %152 = sbr.rel (%p150) target = $region28
    $region27: #{basic_conv_forward.1} parent=5 // pred_region
      // Predicated region
      $region29: #{basic_conv_forward.1} parent=27 // pred_check
        %p153 = pneg %p30
      $region30: #{basic_conv_forward.1} parent=27 // pred_check_branch
        %155 = sbr.rel (%p153) target = $region32
      $region31: #{basic_conv_forward.1} parent=27 // pred_region
        %p156 = scmp.lt.s32.totalorder %s10, 1
        %s157 = scalar_select %p156, %s10, 1
        %s158 = smul.addr %s157, 3
        %s159 = smul.addr %s158, 2
        %s160 = scalar_lea.vmem %s0, %s159
      $region32: #{basic_conv_forward.1} parent=27 // pred_fallthru
        _
    $region28: #{basic_conv_forward.1} parent=5 // pred_fallthru
      _
    %p161 = scmp.le.s32.totalorder 1, %s10
    %p162 = scmp.lt.s32.totalorder %s10, 3
    %p163 = pnand %p161, %p162
    %p164 = pneg %p163
    // Predicated region
    $region33: #{basic_conv_forward.1} parent=5 // pred_check
      _
    $region34: #{basic_conv_forward.1} parent=5 // pred_check_branch
      %166 = sbr.rel (%p163) target = $region36
    $region35: #{basic_conv_forward.1} parent=5 // pred_region
      %s167 = ssub.s32 %s10, 1
      %p168 = scmp.lt.s32.totalorder %s15, 1
      %s169 = scalar_select %p168, %s15, 1
      %s170 = smul.addr %s169, 3
      %s171 = smul.addr %s170, 2
      %s172 = scalar_lea.vmem %s0, %s171
      %p173 = pneg %p36
      %p174 = pneg %p33
      %p175 = pneg %p57
      %p176 = pneg %p54
      %p177 = pneg %p78
      %p178 = pneg %p75
      %p179 = pneg %p99
      %p180 = pneg %p96
      %p181 = pneg %p125
      %p182 = pneg %p122
      %p183 = scmp.lt.s32.totalorder %s15, 1
      %s184 = scalar_select %p183, %s15, 1
      %s185 = smul.addr %s184, 3
      %s186 = smul.addr %s185, 8
      %s187 = scalar_lea.vmem %s4, %s186
      %p188 = scmp.lt.s32.totalorder %s15, 1
      %s189 = scalar_select %p188, %s15, 1
      %s190 = smul.addr %s189, 3
      %s191 = smul.addr %s190, 2
      %s192 = scalar_lea.vmem %s0, %s191
      %p193 = scmp.lt.s32.totalorder %s15, 1
      %s194 = scalar_select %p193, %s15, 1
      %s195 = smul.addr %s194, 3
      %s196 = smul.addr %s195, 8
      %s197 = scalar_lea.vmem %s4, %s196
      %v199 = vld [vmem:[%s192] sm:$0x3f]
      %v200 = vunpack.c.l.bf16 %v199
      %v201 = vunpack.c.h.bf16 %v199
      %v203 = vcombine.high %v200, %v200
      %205 = vst [vmem:[#allocation2] sm:$0xf] %v200
      %206 = vst [vmem:[#allocation2 + $0x8] sm:$0xf] %v203
      %vm207 = vcmask 257024
      %208 = vst.msk [vmem:[#allocation2 + $0x10] sm:$0xf] %vm207, %v201
      %v209 = vld [vmem:[%s192] sm:$0x3f]
      %v210 = vunpack.c.l.bf16 %v209
      %v211 = vunpack.c.h.bf16 %v209
      %v214 = vcombine.low %v210, %v210
      %v215 = vcombine.low %v211, %v211
      %216 = vrot.lane.b32.xlu0 %v214, 127
      %v217 = vpop.permute.xlu0 %216
      %218 = vrot.lane.b32.xlu0 %v210, 127
      %v219 = vpop.permute.xlu0 %218
      %220 = vrot.lane.b32.xlu0 %v215, 127
      %v221 = vpop.permute.xlu0 %220
      %vm222 = vcmask 1039360
      %v223 = vsel %vm222, %v217, %v219
      %v224 = vsel %vm222, %v219, %v221
      %228 = vst [vmem:[#allocation2] sm:$0xf0] %v223
      %229 = vst [vmem:[#allocation2 + $0x8] sm:$0xf0] %v224
      %vm230 = vcmask 261124
      %231 = vst.msk [vmem:[#allocation2 + $0x10] sm:$0xf0] %vm230, %v221
      %v232 = vld [vmem:[%s192] sm:$0x3f]
      %v233 = vunpack.c.l.bf16 %v232
      %v234 = vunpack.c.h.bf16 %v232
      %v237 = vcombine.high %v233, %v233
      %238 = vrot.lane.b32.xlu0 %v233, 126
      %v239 = vpop.permute.xlu0 %238
      %240 = vrot.lane.b32.xlu0 %v237, 126
      %v241 = vpop.permute.xlu0 %240
      %242 = vrot.lane.b32.xlu0 %v234, 126
      %v243 = vpop.permute.xlu0 %242
      %vm244 = vcmask 1031168
      %v245 = vsel %vm244, %v239, %v241
      %v246 = vsel %vm244, %v241, %v243
      %250 = vst [vmem:[#allocation2 + $0x18] sm:$0xf] %v245
      %251 = vst [vmem:[#allocation2 + $0x20] sm:$0xf] %v246
      %252 = vst.msk [vmem:[#allocation2 + $0x28] sm:$0xf] %vm207, %v243
      %v253 = vld [vmem:[%s192] sm:$0x3f]
      %v254 = vunpack.c.l.bf16 %v253
      %v255 = vunpack.c.h.bf16 %v253
      %v258 = vcombine.low %v254, %v254
      %v259 = vcombine.low %v255, %v255
      %260 = vrot.lane.b32.xlu0 %v258, 110
      %v261 = vpop.permute.xlu0 %260
      %262 = vrot.lane.b32.xlu0 %v254, 110
      %v263 = vpop.permute.xlu0 %262
      %264 = vrot.lane.b32.xlu0 %v259, 110
      %v265 = vpop.permute.xlu0 %264
      %vm266 = vcmask 900096
      %v267 = vsel %vm266, %v261, %v263
      %v268 = vsel %vm266, %v263, %v265
      %272 = vst [vmem:[#allocation2 + $0x18] sm:$0xf0] %v267
      %273 = vst [vmem:[#allocation2 + $0x20] sm:$0xf0] %v268
      %274 = vst.msk [vmem:[#allocation2 + $0x28] sm:$0xf0] %vm230, %v265
      %v275 = vld [vmem:[%s192] sm:$0x3f]
      %v276 = vunpack.c.l.bf16 %v275
      %v277 = vunpack.c.h.bf16 %v275
      %v280 = vcombine.high %v276, %v276
      %281 = vrot.lane.b32.xlu0 %v276, 109
      %v282 = vpop.permute.xlu0 %281
      %283 = vrot.lane.b32.xlu0 %v280, 109
      %v284 = vpop.permute.xlu0 %283
      %285 = vrot.lane.b32.xlu0 %v277, 109
      %v286 = vpop.permute.xlu0 %285
      %vm287 = vcmask 891904
      %v288 = vsel %vm287, %v282, %v284
      %v289 = vsel %vm287, %v284, %v286
      %293 = vst [vmem:[#allocation2 + $0x30] sm:$0xf] %v288
      %294 = vst [vmem:[#allocation2 + $0x38] sm:$0xf] %v289
      %295 = vst.msk [vmem:[#allocation2 + $0x40] sm:$0xf] %vm207, %v286
      %v296 = vld [vmem:[%s192] sm:$0x3f]
      %v297 = vunpack.c.l.bf16 %v296
      %v298 = vunpack.c.h.bf16 %v296
      %v301 = vcombine.low %v297, %v297
      %v302 = vcombine.low %v298, %v298
      %303 = vrot.lane.b32.xlu0 %v301, 108
      %v304 = vpop.permute.xlu0 %303
      %305 = vrot.lane.b32.xlu0 %v297, 108
      %v306 = vpop.permute.xlu0 %305
      %307 = vrot.lane.b32.xlu0 %v302, 108
      %v308 = vpop.permute.xlu0 %307
      %vm309 = vcmask 883712
      %v310 = vsel %vm309, %v304, %v306
      %v311 = vsel %vm309, %v306, %v308
      %315 = vst [vmem:[#allocation2 + $0x30] sm:$0xf0] %v310
      %316 = vst [vmem:[#allocation2 + $0x38] sm:$0xf0] %v311
      %317 = vst.msk [vmem:[#allocation2 + $0x40] sm:$0xf0] %vm230, %v308
      %v318 = vld [vmem:[%s192] sm:$0x3f]
      %v319 = vunpack.c.l.bf16 %v318
      %v320 = vunpack.c.h.bf16 %v318
      %v323 = vcombine.high %v319, %v319
      %324 = vrot.lane.b32.xlu0 %v319, 92
      %v325 = vpop.permute.xlu0 %324
      %326 = vrot.lane.b32.xlu0 %v323, 92
      %v327 = vpop.permute.xlu0 %326
      %328 = vrot.lane.b32.xlu0 %v320, 92
      %v329 = vpop.permute.xlu0 %328
      %vm330 = vcmask 752640
      %v331 = vsel %vm330, %v325, %v327
      %v332 = vsel %vm330, %v327, %v329
      %336 = vst [vmem:[#allocation2 + $0x48] sm:$0xf] %v331
      %337 = vst [vmem:[#allocation2 + $0x50] sm:$0xf] %v332
      %338 = vst.msk [vmem:[#allocation2 + $0x58] sm:$0xf] %vm207, %v329
      %v339 = vld [vmem:[%s192] sm:$0x3f]
      %v340 = vunpack.c.l.bf16 %v339
      %v341 = vunpack.c.h.bf16 %v339
      %v344 = vcombine.low %v340, %v340
      %v345 = vcombine.low %v341, %v341
      %346 = vrot.lane.b32.xlu0 %v344, 91
      %v347 = vpop.permute.xlu0 %346
      %348 = vrot.lane.b32.xlu0 %v340, 91
      %v349 = vpop.permute.xlu0 %348
      %350 = vrot.lane.b32.xlu0 %v345, 91
      %v351 = vpop.permute.xlu0 %350
      %vm352 = vcmask 744448
      %v353 = vsel %vm352, %v347, %v349
      %v354 = vsel %vm352, %v349, %v351
      %358 = vst [vmem:[#allocation2 + $0x48] sm:$0xf0] %v353
      %359 = vst [vmem:[#allocation2 + $0x50] sm:$0xf0] %v354
      %360 = vst.msk [vmem:[#allocation2 + $0x58] sm:$0xf0] %vm230, %v351
      %v361 = vld [vmem:[%s192] sm:$0x3f]
      %v362 = vunpack.c.l.bf16 %v361
      %v363 = vunpack.c.h.bf16 %v361
      %v366 = vcombine.high %v362, %v362
      %367 = vrot.lane.b32.xlu0 %v362, 90
      %v368 = vpop.permute.xlu0 %367
      %369 = vrot.lane.b32.xlu0 %v366, 90
      %v370 = vpop.permute.xlu0 %369
      %371 = vrot.lane.b32.xlu0 %v363, 90
      %v372 = vpop.permute.xlu0 %371
      %vm373 = vcmask 736256
      %v374 = vsel %vm373, %v368, %v370
      %v375 = vsel %vm373, %v370, %v372
      %379 = vst [vmem:[#allocation2 + $0x60] sm:$0xf] %v374
      %380 = vst [vmem:[#allocation2 + $0x68] sm:$0xf] %v375
      %381 = vst.msk [vmem:[#allocation2 + $0x70] sm:$0xf] %vm207, %v372
      %v382 = vld [vmem:[%s1] sm:$0xf]
      %v383 = vld [vmem:[#allocation2] sm:$0xff]
      %v384 = vld [vmem:[#allocation2 + $0x8] sm:$0xff]
      %v385 = vld [vmem:[#allocation2 + $0x10] sm:$0xff]
      %v386 = vld [vmem:[#allocation2 + $0x18] sm:$0xff]
      %v387 = vld [vmem:[#allocation2 + $0x20] sm:$0xff]
      %v388 = vld [vmem:[#allocation2 + $0x28] sm:$0xff]
      %v389 = vld [vmem:[#allocation2 + $0x30] sm:$0xff]
      %v390 = vld [vmem:[#allocation2 + $0x38] sm:$0xff]
      %v391 = vld [vmem:[#allocation2 + $0x40] sm:$0xff]
      %v392 = vld [vmem:[#allocation2 + $0x48] sm:$0xff]
      %v393 = vld [vmem:[#allocation2 + $0x50] sm:$0xff]
      %v394 = vld [vmem:[#allocation2 + $0x58] sm:$0xff]
      %v395 = vld [vmem:[#allocation2 + $0x60] sm:$0xf]
      %v396 = vld [vmem:[#allocation2 + $0x68] sm:$0xf]
      %v397 = vld [vmem:[#allocation2 + $0x70] sm:$0xf]
      %v398 = vpack.c.bf16 %v386, %v383
      %v399 = vpack.c.bf16 %v387, %v384
      %v400 = vpack.c.bf16 %v388, %v385
      %v401 = vpack.c.bf16 %v392, %v389
      %v402 = vpack.c.bf16 %v393, %v390
      %v403 = vpack.c.bf16 %v394, %v391
      %v404 = vpack.c.bf16 %v395, %v395
      %v405 = vpack.c.bf16 %v396, %v396
      %v406 = vpack.c.bf16 %v397, %v397
      %vm407 = vcmask 293888
      %v409 = vsel %vm407, %v382, 0
      %vm411 = vcmask 1041408
      %v413 = vsel %vm411, %v404, 0
      %v416 = vsel %vm411, %v405, 0
      %v419 = vsel %vm411, %v406, 0
      %421 = vmatprep.subr.bf16.mxu0 0
      %422 = vmatpush1.bf16.msra.mxu0 0
      %423 = vmatprep.subr.bf16.mxu0 0
      %424 = vmatpush1.bf16.msra.mxu0 0
      %425 = vmatprep.subr.bf16.mxu0 0
      %426 = vmatpush1.bf16.msra.mxu0 0
      %427 = vmatprep.subr.bf16.mxu0 0
      %428 = vmatpush1.bf16.msra.mxu0 0
      %429 = vmatprep.subr.bf16.mxu0 0
      %430 = vmatpush1.bf16.msra.mxu0 0
      %431 = vmatprep.subr.bf16.mxu0 %v416
      %432 = vmatpush1.bf16.msra.mxu0 %v413
      %433 = vmatprep.subr.bf16.mxu0 %v402
      %434 = vmatpush1.bf16.msra.mxu0 %v401
      %435 = vmatprep.subr.bf16.mxu0 %v399
      %436 = vmatpush1.bf16.msra.mxu0 %v398
      %437 = vmatprep.subr.bf16.mxu0 0
      %438 = vmatpush2.bf16.msra.mxu0 0
      %439 = vmatprep.subr.bf16.mxu0 0
      %440 = vmatpush2.bf16.msra.mxu0 0
      %441 = vmatprep.subr.bf16.mxu0 0
      %442 = vmatpush2.bf16.msra.mxu0 0
      %443 = vmatprep.subr.bf16.mxu0 0
      %444 = vmatpush2.bf16.msra.mxu0 0
      %445 = vmatprep.subr.bf16.mxu0 0
      %446 = vmatpush2.bf16.msra.mxu0 0
      %447 = vmatprep.subr.bf16.mxu0 0
      %448 = vmatpush2.bf16.msra.mxu0 0
      %449 = vmatprep.subr.bf16.mxu0 0
      %450 = vmatpush2.bf16.msra.mxu0 0
      %451 = vmatprep.subr.bf16.mxu0 0
      %452 = vmatpush2.bf16.msra.mxu0 0
      %453 = vmatprep.mubr.bf16.mxu0 0
      %454 = vmatmul.mubr.bf16.gmra.mxu0 %v409
      %v455 = vpop.f32.mrf.mxu0
      %v456 = vadd.f32 0.0, %v455
      %v457 = vpop.f32.mrf.mxu0
      %v458 = vadd.f32 0.0, %v457
      %v459 = vpop.f32.mrf.mxu0
      %v460 = vpop.f32.mrf.mxu0
      %461 = vdwg.mxu0
      %462 = vmatprep.subr.bf16.mxu0 0
      %463 = vmatpush1.bf16.msra.mxu0 0
      %464 = vmatprep.subr.bf16.mxu0 0
      %465 = vmatpush1.bf16.msra.mxu0 0
      %466 = vmatprep.subr.bf16.mxu0 0
      %467 = vmatpush1.bf16.msra.mxu0 0
      %468 = vmatprep.subr.bf16.mxu0 0
      %469 = vmatpush1.bf16.msra.mxu0 0
      %470 = vmatprep.subr.bf16.mxu0 0
      %471 = vmatpush1.bf16.msra.mxu0 0
      %472 = vmatprep.subr.bf16.mxu0 0
      %473 = vmatpush1.bf16.msra.mxu0 %v419
      %474 = vmatprep.subr.bf16.mxu0 0
      %475 = vmatpush1.bf16.msra.mxu0 %v403
      %476 = vmatprep.subr.bf16.mxu0 0
      %477 = vmatpush1.bf16.msra.mxu0 %v400
      %478 = vmatprep.subr.bf16.mxu0 0
      %479 = vmatpush2.bf16.msra.mxu0 0
      %480 = vmatprep.subr.bf16.mxu0 0
      %481 = vmatpush2.bf16.msra.mxu0 0
      %482 = vmatprep.subr.bf16.mxu0 0
      %483 = vmatpush2.bf16.msra.mxu0 0
      %484 = vmatprep.subr.bf16.mxu0 0
      %485 = vmatpush2.bf16.msra.mxu0 0
      %486 = vmatprep.subr.bf16.mxu0 0
      %487 = vmatpush2.bf16.msra.mxu0 0
      %488 = vmatprep.subr.bf16.mxu0 0
      %489 = vmatpush2.bf16.msra.mxu0 0
      %490 = vmatprep.subr.bf16.mxu0 0
      %491 = vmatpush2.bf16.msra.mxu0 0
      %492 = vmatprep.subr.bf16.mxu0 0
      %493 = vmatpush2.bf16.msra.mxu0 0
      %494 = vmatprep.mubr.bf16.mxu0 0
      %495 = vmatmul.mubr.bf16.gmra.mxu0 %v409
      %v496 = vpop.f32.mrf.mxu0
      %v497 = vadd.f32 0.0, %v496
      %v498 = vpop.f32.mrf.mxu0
      %v499 = vpop.f32.mrf.mxu0
      %v500 = vpop.f32.mrf.mxu0
      %501 = vdwg.mxu0
      %v502 = vld [vmem:[%s2] sm:$0xff]
      %504 = vset.pattern.permute.xlu0 0
      %505 = vperm.xlu0 %504, %v502
      %v506 = vpop.permute.xlu0 %505
      %v508 = vmul.f32 %v456, %v506
      %v509 = vmul.f32 %v458, %v506
      %v510 = vmul.f32 %v497, %v506
      %v511 = vld [vmem:[%s3] sm:$0xff]
      %513 = vset.pattern.permute.xlu0 0
      %514 = vperm.xlu0 %513, %v511
      %v515 = vpop.permute.xlu0 %514
      %v517 = vadd.f32 %v508, %v515
      %v518 = vadd.f32 %v509, %v515
      %v519 = vadd.f32 %v510, %v515
      %v520 = vmax.f32 %v517, 0.0
      %v521 = vmax.f32 %v518, 0.0
      %v522 = vmax.f32 %v519, 0.0
      %523 = vst [vmem:[%s197] sm:$0xff] %v520
      %524 = vst [vmem:[%s197 + $0x8] sm:$0xff] %v521
      %vm525 = vcmask 261120
      %526 = vst.msk [vmem:[%s197 + $0x10] sm:$0xff] %vm525, %v522
      %p527 = scmp.lt.s32.totalorder %s15, 1
      %s528 = scalar_select %p527, %s15, 1
      %s529 = smul.addr %s528, 3
      %s530 = smul.addr %s529, 8
      %s531 = scalar_lea.vmem %s4, %s530
      // Predicated region
      $region37: #{basic_conv_forward.1} parent=35 // pred_check
        %p532 = pneg %p122
      $region38: #{basic_conv_forward.1} parent=35 // pred_check_branch
        %534 = sbr.rel (%p532) target = $region40
      $region39: #{basic_conv_forward.1} parent=35 // pred_region
        _
      $region40: #{basic_conv_forward.1} parent=35 // pred_fallthru
        _
    $region36: #{basic_conv_forward.1} parent=5 // pred_fallthru
      _
    %p535 = scmp.le.s32.totalorder 2, %s10
    // Predicated region
    $region41: #{basic_conv_forward.1} parent=5 // pred_check
      %p536 = pneg %p535
    $region42: #{basic_conv_forward.1} parent=5 // pred_check_branch
      %538 = sbr.rel (%p536) target = $region44
    $region43: #{basic_conv_forward.1} parent=5 // pred_region
      %s539 = ssub.s32 %s10, 2
      // Predicated region
      $region45: #{basic_conv_forward.1} parent=43 // pred_check
        %p540 = pneg %p128
      $region46: #{basic_conv_forward.1} parent=43 // pred_check_branch
        %542 = sbr.rel (%p540) target = $region48
      $region47: #{basic_conv_forward.1} parent=43 // pred_region
        %p543 = scmp.lt.s32.totalorder %s16, 1
        %s544 = scalar_select %p543, %s16, 1
        %s545 = smul.addr %s544, 3
        %s546 = smul.addr %s545, 8
        %s547 = scalar_lea.vmem %s4, %s546
      $region48: #{basic_conv_forward.1} parent=43 // pred_fallthru
        _
    $region44: #{basic_conv_forward.1} parent=5 // pred_fallthru
      _
  $region6: #{basic_conv_forward.1} parent=0 // loop_footer
    %s14 = sadd.s32 1, %s10
  $region7: #{basic_conv_forward.1} parent=0 // loop_footer_branch
    %9 = sbr.rel target = $region3
  $region8: #{basic_conv_forward.1} parent=0 // loop_exit
    _

</llo_original>
